<compile_context>
chip_gen: v6e
topology: v6e:2x2x1
jax: 0.10.0
libtpu: 0.0.40
codegen_flags: <defaults>
</compile_context>

<pallas_src>
import jax
import jax.numpy as jnp
from jax.experimental import pallas as pl
from jax.experimental.pallas import tpu as pltpu

INPLANES = 16
C_IMG = 3
C_CTX = 3 * INPLANES                  # 48
C_FLOWFEAT = 2 + 1 + C_CTX            # 51  (flow | inv_depth | context)
C_CAT = C_IMG + 1 + C_CTX             # 52  (image | inv_depth | context)
C_KER = 16
NUM_FLOW_ITER = 3
LEAKY_SLOPE = 0.02

# Row layout of the packed image-consuming weight/bias (sublane-tile aligned).
ROW_DEPTH = 0                         # 1 row  : InvDepthMapEstimator
ROW_CTX = 8                           # 48 rows: ContextExtraction
ROW_KER = ROW_CTX + C_CTX             # 56, 16 rows: KernelEstimation
ROW_SYN = ROW_KER + C_KER             # 72, 3 rows : FrameSynthesis (image term)
N_ROWS_IMG = 80                       # padded to a multiple of 8

# Row layout of the packed context-consuming weight/bias.
ROWZ_FLOW = 0                         # 2 rows: FlowGeneration context term (+bf)
ROWZ_SYN = 8                          # 3 rows: FrameSynthesis context term
N_ROWS_CTX = 16                       # padded to a multiple of 8


def _round_up(x, m):
    return (x + m - 1) // m * m


def _leaky(x, slope):
    return jnp.where(x > 0, x, slope * x)


def next_image_kernel(img_ref, flw_ref,
                      wimg_ref, bimg_ref,
                      wctx_ref, bctx_ref,
                      small_ref,
                      next_ref, flow_out_ref):
    # Channel-major tiles: [C, T] with T pixels on lanes.
    img = img_ref[...].astype(jnp.float32)        # [3, T]
    flw = flw_ref[...].astype(jnp.float32)        # [2, T]

    # --- all image-consuming 1x1 convs fused into one MXU matmul ---
    y = (jnp.dot(wimg_ref[...], img, preferred_element_type=jnp.float32)
         + bimg_ref[...])                         # [80, T]
    # InvDepthMapEstimator: positive inverse depth via softplus
    inv_depth = jax.nn.softplus(y[ROW_DEPTH:ROW_DEPTH + 1])          # [1, T]
    # ContextExtraction: leaky relu
    context = _leaky(y[ROW_CTX:ROW_CTX + C_CTX], LEAKY_SLOPE)        # [48, T]
    # KernelEstimation: leaky relu (slope 0.02)
    ker = _leaky(y[ROW_KER:ROW_KER + C_KER], LEAKY_SLOPE)            # [16, T]
    # FrameSynthesis image term (bias-free, applied later)
    syn_img = y[ROW_SYN:ROW_SYN + C_IMG]                             # [3, T]

    # --- DepthAwareFlowInitialization (backward): depth-modulated flow ---
    flw = flw * (1.0 + inv_depth)                                    # [2, T]

    # --- all context-consuming matmuls fused into one MXU matmul ---
    z = (jnp.dot(wctx_ref[...], context, preferred_element_type=jnp.float32)
         + bctx_ref[...])                                            # [16, T]

    sm = small_ref[...]                                              # [8, 8]
    wf_f0 = sm[0:2, 0:1]          # flow[0] -> delta   [2, 1]
    wf_f1 = sm[0:2, 1:2]          # flow[1] -> delta   [2, 1]
    wf_d = sm[0:2, 2:3]           # depth   -> delta   [2, 1]
    ws_d = sm[0:3, 3:4]           # depth   -> synth   [3, 1]
    bs = sm[0:3, 4:5]             # synthesis bias     [3, 1]

    # --- FlowGeneration: loop-invariant part hoisted, no concatenates ---
    base = z[ROWZ_FLOW:ROWZ_FLOW + 2] + wf_d * inv_depth             # [2, T]
    for _ in range(NUM_FLOW_ITER):
        delta = jnp.tanh(base + wf_f0 * flw[0:1] + wf_f1 * flw[1:2])
        flw = flw + delta

    # --- AdaptiveWarpingLayer (simplified): per-pixel adaptive-kernel gate ---
    # TODO(synk): the true AdaptiveWarpingLayer performs flow-driven spatial
    # resampling (data-dependent gather across pixels via manual DMA); only the
    # per-pixel adaptive-kernel modulation is modelled here.
    gate = jax.nn.sigmoid(jnp.mean(ker, axis=0, keepdims=True))      # [1, T]

    # --- FrameSynthesis: gate distributes over the (split) 1x1 conv ---
    syn_ctx = z[ROWZ_SYN:ROWZ_SYN + C_IMG]                           # [3, T]
    next_img = gate * (syn_img + ws_d * inv_depth + syn_ctx) + bs    # [3, T]

    next_ref[...] = next_img.astype(next_ref.dtype)
    flow_out_ref[...] = flw.astype(flow_out_ref.dtype)


def make_params(key):
    """Per-layer weights in channel-major [C_out, C_in] layout.

    Flattening convention: Wf columns = [flow(2) | inv_depth(1) | context(48)],
    Ws columns = [image(3) | inv_depth(1) | context(48)].
    """
    ks = jax.random.split(key, 10)

    def w(k, shape, scale=0.1):
        return jax.random.normal(k, shape, jnp.float32) * scale

    return {
        "Wd": w(ks[0], (1, C_IMG)),          "bd": w(ks[1], (1,)),
        "Wc": w(ks[2], (C_CTX, C_IMG)),      "bc": w(ks[3], (C_CTX,)),
        "Wf": w(ks[4], (2, C_FLOWFEAT)),     "bf": w(ks[5], (2,)),
        "Wk": w(ks[6], (C_KER, C_IMG)),      "bk": w(ks[7], (C_KER,)),
        "Ws": w(ks[8], (C_IMG, C_CAT)),      "bs": w(ks[9], (C_IMG,)),
    }


def pack_params(p):
    """Pack the per-layer weights into the kernel's fused/aligned constants."""
    wimg = jnp.zeros((N_ROWS_IMG, C_IMG), jnp.float32)
    wimg = wimg.at[ROW_DEPTH:ROW_DEPTH + 1].set(p["Wd"])
    wimg = wimg.at[ROW_CTX:ROW_CTX + C_CTX].set(p["Wc"])
    wimg = wimg.at[ROW_KER:ROW_KER + C_KER].set(p["Wk"])
    wimg = wimg.at[ROW_SYN:ROW_SYN + C_IMG].set(p["Ws"][:, 0:C_IMG])

    bimg = jnp.zeros((N_ROWS_IMG, 1), jnp.float32)
    bimg = bimg.at[ROW_DEPTH:ROW_DEPTH + 1, 0].set(p["bd"])
    bimg = bimg.at[ROW_CTX:ROW_CTX + C_CTX, 0].set(p["bc"])
    bimg = bimg.at[ROW_KER:ROW_KER + C_KER, 0].set(p["bk"])
    # (FrameSynthesis bias is applied after the gate, so it is NOT folded here.)

    wctx = jnp.zeros((N_ROWS_CTX, C_CTX), jnp.float32)
    wctx = wctx.at[ROWZ_FLOW:ROWZ_FLOW + 2].set(p["Wf"][:, 3:3 + C_CTX])
    wctx = wctx.at[ROWZ_SYN:ROWZ_SYN + C_IMG].set(p["Ws"][:, 4:4 + C_CTX])

    bctx = jnp.zeros((N_ROWS_CTX, 1), jnp.float32)
    bctx = bctx.at[ROWZ_FLOW:ROWZ_FLOW + 2, 0].set(p["bf"])   # FlowGen bias folded

    small = jnp.zeros((8, 8), jnp.float32)
    small = small.at[0:2, 0:2].set(p["Wf"][:, 0:2])   # flow -> flow-delta weights
    small = small.at[0:2, 2].set(p["Wf"][:, 2])       # depth -> flow-delta weights
    small = small.at[0:3, 3].set(p["Ws"][:, 3])       # depth -> synthesis weights
    small = small.at[0:3, 4].set(p["bs"])             # synthesis bias

    return {"Wimg": wimg, "bimg": bimg, "Wctx": wctx, "bctx": bctx, "small": small}


def next_image_prediction(image_nchw, flow_nchw, packed, *, tile=1024,
                          input_dtype=None):
    B, C, H, W = image_nchw.shape
    assert C == C_IMG and flow_nchw.shape == (B, 2, H, W)
    HW = H * W

    # Pixel tile: lane-dense (multiple of 128), clamped to the (padded) image.
    tile = min(tile, _round_up(HW, 128))
    HW_pad = _round_up(HW, tile)
    n_tiles = HW_pad // tile
    # TODO(synk): for multi-megapixel frames, add an in-kernel lax.fori_loop over
    # 512-lane sub-chunks so the HBM tile can grow well past 2048 pixels without
    # vreg spills (further amortizing the ~0.35us per-grid-step overhead).

    # NCHW -> channel-major (B, C, HW): a free reshape, no transpose.
    img3 = image_nchw.reshape(B, C_IMG, HW)
    flw3 = flow_nchw.reshape(B, 2, HW)
    if HW_pad != HW:
        pad = ((0, 0), (0, 0), (0, HW_pad - HW))
        img3 = jnp.pad(img3, pad)
        flw3 = jnp.pad(flw3, pad)
    if input_dtype is not None:
        # bf16 at the boundary halves input HBM traffic on v6e/v7x; the kernel
        # upcasts to f32 right after load, which keeps v5e's VPU/EUP happy.
        img3 = img3.astype(input_dtype)
        flw3 = flw3.astype(input_dtype)

    def pix_spec(c):
        return pl.BlockSpec((None, c, tile), lambda b, i: (b, 0, i))

    def w_spec(arr):
        return pl.BlockSpec(arr.shape, lambda b, i: (0, 0))

    in_specs = [
        pix_spec(C_IMG),                    # image   [3, tile]
        pix_spec(2),                        # flow    [2, tile]
        w_spec(packed["Wimg"]), w_spec(packed["bimg"]),
        w_spec(packed["Wctx"]), w_spec(packed["bctx"]),
        w_spec(packed["small"]),
    ]
    out_specs = [pix_spec(C_IMG), pix_spec(2)]
    out_shape = [
        jax.ShapeDtypeStruct((B, C_IMG, HW_pad), jnp.float32),
        jax.ShapeDtypeStruct((B, 2, HW_pad), jnp.float32),
    ]

    next_rows, flow_rows = pl.pallas_call(
        next_image_kernel,
        out_shape=out_shape,
        grid_spec=pltpu.PrefetchScalarGridSpec(
            num_scalar_prefetch=0,
            grid=(B, n_tiles),
            in_specs=in_specs,
            out_specs=out_specs,
        ),
        compiler_params=pltpu.CompilerParams(
            dimension_semantics=("parallel", "parallel"),
            vmem_limit_bytes=32 * 1024 * 1024),
    )(img3, flw3,
      packed["Wimg"], packed["bimg"],
      packed["Wctx"], packed["bctx"],
      packed["small"])

    # (B, C, HW_pad) -> NCHW: slice the padding off, free reshape, no transpose.
    next_image = next_rows[:, :, :HW].reshape(B, C_IMG, H, W)
    flow_after = flow_rows[:, :, :HW].reshape(B, 2, H, W)
    return next_image, flow_after


if __name__ == "__main__":
    key = jax.random.PRNGKey(0)
    k_img, k_flow, k_params = jax.random.split(key, 3)

    B, H, W = 2, 16, 16
    image = jax.random.normal(k_img, (B, C_IMG, H, W), jnp.float32)
    flow_before = jax.random.normal(k_flow, (B, 2, H, W), jnp.float32)
    params = make_params(k_params)
    packed = pack_params(params)

    next_image, flow_after = next_image_prediction(
        image, flow_before, packed, tile=1024, input_dtype=jnp.bfloat16)
    jax.block_until_ready((next_image, flow_after))

    assert next_image.shape == (B, 3, H, W)
    assert flow_after.shape == (B, 2, H, W)
    print("KERNEL_OK")
</pallas_src>

<mosaic_0001>
module attributes {stable_mosaic.version = 11 : i64} {
  func.func @next_image_kernel(%arg0: i32, %arg1: i32, %arg2: memref<1x3x256xbf16, #tpu.memory_space<vmem>>, %arg3: memref<1x2x256xbf16, #tpu.memory_space<vmem>>, %arg4: memref<80x3xf32, #tpu.memory_space<vmem>>, %arg5: memref<80x1xf32, #tpu.memory_space<vmem>>, %arg6: memref<16x48xf32, #tpu.memory_space<vmem>>, %arg7: memref<16x1xf32, #tpu.memory_space<vmem>>, %arg8: memref<8x8xf32, #tpu.memory_space<vmem>>, %arg9: memref<1x3x256xf32, #tpu.memory_space<vmem>>, %arg10: memref<1x2x256xf32, #tpu.memory_space<vmem>>) attributes {dimension_semantics = [#tpu.dimension_semantics<parallel>, #tpu.dimension_semantics<parallel>], iteration_bounds = array<i64: 2, 1>, scalar_prefetch = 0 : i64, scratch_operands = 0 : i64, tpu.core_type = #tpu.core_type<tc>, window_params = [{transform_indices = @transform_0, window_bounds = array<i64: 1, 3, 256>}, {transform_indices = @transform_1, window_bounds = array<i64: 1, 2, 256>}, {pipeline_mode = #tpu.pipeline_mode<synchronous>, transform_indices = @transform_2, window_bounds = array<i64: 80, 3>}, {pipeline_mode = #tpu.pipeline_mode<synchronous>, transform_indices = @transform_3, window_bounds = array<i64: 80, 1>}, {pipeline_mode = #tpu.pipeline_mode<synchronous>, transform_indices = @transform_4, window_bounds = array<i64: 16, 48>}, {pipeline_mode = #tpu.pipeline_mode<synchronous>, transform_indices = @transform_5, window_bounds = array<i64: 16, 1>}, {pipeline_mode = #tpu.pipeline_mode<synchronous>, transform_indices = @transform_6, window_bounds = array<i64: 8, 8>}, {transform_indices = @transform_7, window_bounds = array<i64: 1, 3, 256>}, {transform_indices = @transform_8, window_bounds = array<i64: 1, 2, 256>}]} {
    %c0 = arith.constant 0 : index
    %c0_0 = arith.constant 0 : index
    %c0_1 = arith.constant 0 : index
    %0 = vector.load %arg2[%c0, %c0_0, %c0_1] : memref<1x3x256xbf16, #tpu.memory_space<vmem>>, vector<1x3x256xbf16>
    %1 = vector.shape_cast %0 : vector<1x3x256xbf16> to vector<3x256xbf16>
    %2 = arith.extf %1 : vector<3x256xbf16> to vector<3x256xf32>
    %c0_2 = arith.constant 0 : index
    %c0_3 = arith.constant 0 : index
    %c0_4 = arith.constant 0 : index
    %3 = vector.load %arg3[%c0_2, %c0_3, %c0_4] : memref<1x2x256xbf16, #tpu.memory_space<vmem>>, vector<1x2x256xbf16>
    %4 = vector.shape_cast %3 : vector<1x2x256xbf16> to vector<2x256xbf16>
    %5 = arith.extf %4 : vector<2x256xbf16> to vector<2x256xf32>
    %c0_5 = arith.constant 0 : index
    %c0_6 = arith.constant 0 : index
    %6 = vector.load %arg4[%c0_5, %c0_6] : memref<80x3xf32, #tpu.memory_space<vmem>>, vector<80x3xf32>
    %cst = arith.constant dense<0.000000e+00> : vector<80x256xf32>
    %7 = tpu.matmul %6, %2, %cst {dimension_numbers = #tpu.dot_dimension_numbers<[1], [0], [0], [1], [0, 0, 1, 1], [], []>} : vector<80x3xf32>, vector<3x256xf32>, vector<80x256xf32> -> vector<80x256xf32>
    %c0_7 = arith.constant 0 : index
    %c0_8 = arith.constant 0 : index
    %8 = vector.load %arg5[%c0_7, %c0_8] : memref<80x1xf32, #tpu.memory_space<vmem>>, vector<80x1xf32>
    %9 = vector.broadcast %8 : vector<80x1xf32> to vector<80x256xf32>
    %10 = arith.addf %7, %9 : vector<80x256xf32>
    %11 = vector.extract_strided_slice %10 {offsets = [0, 0], sizes = [1, 256], strides = [1, 1]} : vector<80x256xf32> to vector<1x256xf32>
    %cst_9 = arith.constant 0.000000e+00 : f32
    %12 = vector.broadcast %cst_9 : f32 to vector<1x256xf32>
    %13 = arith.maximumf %11, %12 : vector<1x256xf32>
    %14 = vector.broadcast %cst_9 : f32 to vector<1x256xf32>
    %15 = arith.subf %11, %14 : vector<1x256xf32>
    %16 = arith.cmpf one, %15, %15 : vector<1x256xf32>
    %17 = vector.broadcast %cst_9 : f32 to vector<1x256xf32>
    %18 = arith.addf %11, %17 : vector<1x256xf32>
    %19 = math.absf %15 : vector<1x256xf32>
    %cst_10 = arith.constant 0.000000e+00 : f32
    %20 = vector.broadcast %cst_10 : f32 to vector<1x256xf32>
    %21 = arith.subf %20, %19 : vector<1x256xf32>
    %22 = math.exp %21 : vector<1x256xf32>
    %23 = math.log1p %22 : vector<1x256xf32>
    %24 = arith.addf %13, %23 : vector<1x256xf32>
    %25 = arith.select %16, %18, %24 : vector<1x256xi1>, vector<1x256xf32>
    %26 = vector.extract_strided_slice %10 {offsets = [8, 0], sizes = [48, 256], strides = [1, 1]} : vector<80x256xf32> to vector<48x256xf32>
    %cst_11 = arith.constant 0.000000e+00 : f32
    %27 = vector.broadcast %cst_11 : f32 to vector<48x256xf32>
    %28 = arith.cmpf ogt, %26, %27 : vector<48x256xf32>
    %cst_12 = arith.constant 2.000000e-02 : f32
    %29 = vector.broadcast %cst_12 : f32 to vector<48x256xf32>
    %30 = arith.mulf %29, %26 : vector<48x256xf32>
    %31 = arith.select %28, %26, %30 : vector<48x256xi1>, vector<48x256xf32>
    %32 = vector.extract_strided_slice %10 {offsets = [56, 0], sizes = [16, 256], strides = [1, 1]} : vector<80x256xf32> to vector<16x256xf32>
    %cst_13 = arith.constant 0.000000e+00 : f32
    %33 = vector.broadcast %cst_13 : f32 to vector<16x256xf32>
    %34 = arith.cmpf ogt, %32, %33 : vector<16x256xf32>
    %cst_14 = arith.constant 2.000000e-02 : f32
    %35 = vector.broadcast %cst_14 : f32 to vector<16x256xf32>
    %36 = arith.mulf %35, %32 : vector<16x256xf32>
    %37 = arith.select %34, %32, %36 : vector<16x256xi1>, vector<16x256xf32>
    %38 = vector.extract_strided_slice %10 {offsets = [72, 0], sizes = [3, 256], strides = [1, 1]} : vector<80x256xf32> to vector<3x256xf32>
    %cst_15 = arith.constant 1.000000e+00 : f32
    %39 = vector.broadcast %cst_15 : f32 to vector<1x256xf32>
    %40 = arith.addf %39, %25 : vector<1x256xf32>
    %41 = vector.broadcast %40 : vector<1x256xf32> to vector<2x256xf32>
    %42 = arith.mulf %5, %41 : vector<2x256xf32>
    %c0_16 = arith.constant 0 : index
    %c0_17 = arith.constant 0 : index
    %43 = vector.load %arg6[%c0_16, %c0_17] : memref<16x48xf32, #tpu.memory_space<vmem>>, vector<16x48xf32>
    %cst_18 = arith.constant dense<0.000000e+00> : vector<16x256xf32>
    %44 = tpu.matmul %43, %31, %cst_18 {dimension_numbers = #tpu.dot_dimension_numbers<[1], [0], [0], [1], [0, 0, 1, 1], [], []>} : vector<16x48xf32>, vector<48x256xf32>, vector<16x256xf32> -> vector<16x256xf32>
    %c0_19 = arith.constant 0 : index
    %c0_20 = arith.constant 0 : index
    %45 = vector.load %arg7[%c0_19, %c0_20] : memref<16x1xf32, #tpu.memory_space<vmem>>, vector<16x1xf32>
    %46 = vector.broadcast %45 : vector<16x1xf32> to vector<16x256xf32>
    %47 = arith.addf %44, %46 : vector<16x256xf32>
    %c0_21 = arith.constant 0 : index
    %c0_22 = arith.constant 0 : index
    %48 = vector.load %arg8[%c0_21, %c0_22] : memref<8x8xf32, #tpu.memory_space<vmem>>, vector<8x8xf32>
    %49 = vector.extract_strided_slice %48 {offsets = [0, 0], sizes = [2, 1], strides = [1, 1]} : vector<8x8xf32> to vector<2x1xf32>
    %50 = vector.extract_strided_slice %48 {offsets = [0, 1], sizes = [2, 1], strides = [1, 1]} : vector<8x8xf32> to vector<2x1xf32>
    %51 = vector.extract_strided_slice %48 {offsets = [0, 2], sizes = [2, 1], strides = [1, 1]} : vector<8x8xf32> to vector<2x1xf32>
    %52 = vector.extract_strided_slice %48 {offsets = [0, 3], sizes = [3, 1], strides = [1, 1]} : vector<8x8xf32> to vector<3x1xf32>
    %53 = vector.extract_strided_slice %48 {offsets = [0, 4], sizes = [3, 1], strides = [1, 1]} : vector<8x8xf32> to vector<3x1xf32>
    %54 = vector.extract_strided_slice %47 {offsets = [0, 0], sizes = [2, 256], strides = [1, 1]} : vector<16x256xf32> to vector<2x256xf32>
    %55 = vector.broadcast %51 : vector<2x1xf32> to vector<2x256xf32>
    %56 = vector.broadcast %25 : vector<1x256xf32> to vector<2x256xf32>
    %57 = arith.mulf %55, %56 : vector<2x256xf32>
    %58 = arith.addf %54, %57 : vector<2x256xf32>
    %59 = vector.extract_strided_slice %42 {offsets = [0, 0], sizes = [1, 256], strides = [1, 1]} : vector<2x256xf32> to vector<1x256xf32>
    %60 = vector.broadcast %49 : vector<2x1xf32> to vector<2x256xf32>
    %61 = vector.broadcast %59 : vector<1x256xf32> to vector<2x256xf32>
    %62 = arith.mulf %60, %61 : vector<2x256xf32>
    %63 = arith.addf %58, %62 : vector<2x256xf32>
    %64 = vector.extract_strided_slice %42 {offsets = [1, 0], sizes = [1, 256], strides = [1, 1]} : vector<2x256xf32> to vector<1x256xf32>
    %65 = vector.broadcast %50 : vector<2x1xf32> to vector<2x256xf32>
    %66 = vector.broadcast %64 : vector<1x256xf32> to vector<2x256xf32>
    %67 = arith.mulf %65, %66 : vector<2x256xf32>
    %68 = arith.addf %63, %67 : vector<2x256xf32>
    %69 = math.tanh %68 : vector<2x256xf32>
    %70 = arith.addf %42, %69 : vector<2x256xf32>
    %71 = vector.extract_strided_slice %70 {offsets = [0, 0], sizes = [1, 256], strides = [1, 1]} : vector<2x256xf32> to vector<1x256xf32>
    %72 = vector.broadcast %49 : vector<2x1xf32> to vector<2x256xf32>
    %73 = vector.broadcast %71 : vector<1x256xf32> to vector<2x256xf32>
    %74 = arith.mulf %72, %73 : vector<2x256xf32>
    %75 = arith.addf %58, %74 : vector<2x256xf32>
    %76 = vector.extract_strided_slice %70 {offsets = [1, 0], sizes = [1, 256], strides = [1, 1]} : vector<2x256xf32> to vector<1x256xf32>
    %77 = vector.broadcast %50 : vector<2x1xf32> to vector<2x256xf32>
    %78 = vector.broadcast %76 : vector<1x256xf32> to vector<2x256xf32>
    %79 = arith.mulf %77, %78 : vector<2x256xf32>
    %80 = arith.addf %75, %79 : vector<2x256xf32>
    %81 = math.tanh %80 : vector<2x256xf32>
    %82 = arith.addf %70, %81 : vector<2x256xf32>
    %83 = vector.extract_strided_slice %82 {offsets = [0, 0], sizes = [1, 256], strides = [1, 1]} : vector<2x256xf32> to vector<1x256xf32>
    %84 = vector.broadcast %49 : vector<2x1xf32> to vector<2x256xf32>
    %85 = vector.broadcast %83 : vector<1x256xf32> to vector<2x256xf32>
    %86 = arith.mulf %84, %85 : vector<2x256xf32>
    %87 = arith.addf %58, %86 : vector<2x256xf32>
    %88 = vector.extract_strided_slice %82 {offsets = [1, 0], sizes = [1, 256], strides = [1, 1]} : vector<2x256xf32> to vector<1x256xf32>
    %89 = vector.broadcast %50 : vector<2x1xf32> to vector<2x256xf32>
    %90 = vector.broadcast %88 : vector<1x256xf32> to vector<2x256xf32>
    %91 = arith.mulf %89, %90 : vector<2x256xf32>
    %92 = arith.addf %87, %91 : vector<2x256xf32>
    %93 = math.tanh %92 : vector<2x256xf32>
    %94 = arith.addf %82, %93 : vector<2x256xf32>
    %cst_23 = arith.constant dense<0.000000e+00> : vector<256xf32>
    %95 = vector.multi_reduction <add>, %37, %cst_23 [0] : vector<16x256xf32> to vector<256xf32>
    %96 = vector.shape_cast %95 : vector<256xf32> to vector<1x256xf32>
    %cst_24 = arith.constant 1.600000e+01 : f32
    %97 = vector.broadcast %cst_24 : f32 to vector<1x256xf32>
    %98 = arith.divf %96, %97 : vector<1x256xf32>
    %99 = arith.negf %98 : vector<1x256xf32>
    %100 = math.exp %99 : vector<1x256xf32>
    %cst_25 = arith.constant 1.000000e+00 : f32
    %101 = vector.broadcast %cst_25 : f32 to vector<1x256xf32>
    %102 = arith.addf %101, %100 : vector<1x256xf32>
    %103 = arith.divf %101, %102 : vector<1x256xf32>
    %104 = vector.extract_strided_slice %47 {offsets = [8, 0], sizes = [3, 256], strides = [1, 1]} : vector<16x256xf32> to vector<3x256xf32>
    %105 = vector.broadcast %52 : vector<3x1xf32> to vector<3x256xf32>
    %106 = vector.broadcast %25 : vector<1x256xf32> to vector<3x256xf32>
    %107 = arith.mulf %105, %106 : vector<3x256xf32>
    %108 = arith.addf %38, %107 : vector<3x256xf32>
    %109 = arith.addf %108, %104 : vector<3x256xf32>
    %110 = vector.broadcast %103 : vector<1x256xf32> to vector<3x256xf32>
    %111 = arith.mulf %110, %109 : vector<3x256xf32>
    %112 = vector.broadcast %53 : vector<3x1xf32> to vector<3x256xf32>
    %113 = arith.addf %111, %112 : vector<3x256xf32>
    %c0_26 = arith.constant 0 : index
    %c0_27 = arith.constant 0 : index
    %c0_28 = arith.constant 0 : index
    %114 = vector.load %arg9[%c0_26, %c0_27, %c0_28] : memref<1x3x256xf32, #tpu.memory_space<vmem>>, vector<1x3x256xf32>
    %115 = vector.shape_cast %114 : vector<1x3x256xf32> to vector<3x256xf32>
    %116 = vector.shape_cast %113 : vector<3x256xf32> to vector<1x3x256xf32>
    tpu.vector_store %arg9[%c0_26, %c0_27, %c0_28], %116 {strides = array<i32>} : memref<1x3x256xf32, #tpu.memory_space<vmem>>, vector<1x3x256xf32>,
    %c0_29 = arith.constant 0 : index
    %c0_30 = arith.constant 0 : index
    %c0_31 = arith.constant 0 : index
    %117 = vector.load %arg10[%c0_29, %c0_30, %c0_31] : memref<1x2x256xf32, #tpu.memory_space<vmem>>, vector<1x2x256xf32>
    %118 = vector.shape_cast %117 : vector<1x2x256xf32> to vector<2x256xf32>
    %119 = vector.shape_cast %94 : vector<2x256xf32> to vector<1x2x256xf32>
    tpu.vector_store %arg10[%c0_29, %c0_30, %c0_31], %119 {strides = array<i32>} : memref<1x2x256xf32, #tpu.memory_space<vmem>>, vector<1x2x256xf32>,
    return
  }
  func.func @transform_0(%arg0: i32, %arg1: i32) -> (i32, i32, i32) {
    %c0_i32 = arith.constant 0 : i32
    %c0_i32_0 = arith.constant 0 : i32
    return %arg0, %c0_i32, %arg1 : i32, i32, i32
  }
  func.func @transform_1(%arg0: i32, %arg1: i32) -> (i32, i32, i32) {
    %c0_i32 = arith.constant 0 : i32
    %c0_i32_0 = arith.constant 0 : i32
    return %arg0, %c0_i32, %arg1 : i32, i32, i32
  }
  func.func @transform_2(%arg0: i32, %arg1: i32) -> (i32, i32) {
    %c0_i32 = arith.constant 0 : i32
    %c0_i32_0 = arith.constant 0 : i32
    %c0_i32_1 = arith.constant 0 : i32
    return %c0_i32, %c0_i32_0 : i32, i32
  }
  func.func @transform_3(%arg0: i32, %arg1: i32) -> (i32, i32) {
    %c0_i32 = arith.constant 0 : i32
    %c0_i32_0 = arith.constant 0 : i32
    %c0_i32_1 = arith.constant 0 : i32
    return %c0_i32, %c0_i32_0 : i32, i32
  }
  func.func @transform_4(%arg0: i32, %arg1: i32) -> (i32, i32) {
    %c0_i32 = arith.constant 0 : i32
    %c0_i32_0 = arith.constant 0 : i32
    %c0_i32_1 = arith.constant 0 : i32
    return %c0_i32, %c0_i32_0 : i32, i32
  }
  func.func @transform_5(%arg0: i32, %arg1: i32) -> (i32, i32) {
    %c0_i32 = arith.constant 0 : i32
    %c0_i32_0 = arith.constant 0 : i32
    %c0_i32_1 = arith.constant 0 : i32
    return %c0_i32, %c0_i32_0 : i32, i32
  }
  func.func @transform_6(%arg0: i32, %arg1: i32) -> (i32, i32) {
    %c0_i32 = arith.constant 0 : i32
    %c0_i32_0 = arith.constant 0 : i32
    %c0_i32_1 = arith.constant 0 : i32
    return %c0_i32, %c0_i32_0 : i32, i32
  }
  func.func @transform_7(%arg0: i32, %arg1: i32) -> (i32, i32, i32) {
    %c0_i32 = arith.constant 0 : i32
    %c0_i32_0 = arith.constant 0 : i32
    return %arg0, %c0_i32, %arg1 : i32, i32, i32
  }
  func.func @transform_8(%arg0: i32, %arg1: i32) -> (i32, i32, i32) {
    %c0_i32 = arith.constant 0 : i32
    %c0_i32_0 = arith.constant 0 : i32
    return %arg0, %c0_i32, %arg1 : i32, i32, i32
  }
}

</mosaic_0001>

<llo_original>
// kernel: tpu_custom_call.1
$region0: #{tpu_custom_call.1}
  #allocation0 [shape = 'u32[]', space=smem, size = 0x4, offset = 0x4, fixed_abs, tag = 'smem constant byte address 0x4 - core index']
  #allocation1 [shape = 'u32[144,128]{1,0:T(1,128)}', space=vmem, size = 0x12000, scoped, tag = 'internal scratch']
  %s0 = inlined_call_operand.vmem [shape: bf16[2,3,256], index: 0, kind: input, shape index: {}]
  %s1 = inlined_call_operand.vmem [shape: bf16[2,2,256], index: 1, kind: input, shape index: {}]
  %s2 = inlined_call_operand.vmem [shape: f32[80,3], index: 2, kind: input, shape index: {}]
  %s3 = inlined_call_operand.vmem [shape: f32[80,1], index: 3, kind: input, shape index: {}]
  %s4 = inlined_call_operand.vmem [shape: f32[16,48], index: 4, kind: input, shape index: {}]
  %s5 = inlined_call_operand.vmem [shape: f32[16,1], index: 5, kind: input, shape index: {}]
  %s6 = inlined_call_operand.vmem [shape: f32[8,8], index: 6, kind: input, shape index: {}]
  %s7 = inlined_call_operand.vmem [shape: f32[2,3,256], index: 7, kind: output, shape index: {0}]
  %s8 = inlined_call_operand.hbm [shape: f32[2,2,256], index: 8, kind: output, shape index: {1}]
  %9 = xla_tuple %s7, %s8
  %s10 = sld [smem:[#allocation0]]
  $region69: #{tpu_custom_call.1} parent=0
    _
  %s12 = ssub.s32 1, %s10
  %s13 = scalar_select 0, %s12, %s10
  $region1: #{tpu_custom_call.1} parent=0
    #allocation2 [shape = 'u8[4096]{0}', space=vmem, size = 0x1000, scoped, tag = 'output window, operand 1']
    #allocation3 [shape = 's32[2]{0}', space=sflag, size = 0x8, scoped, tag = 'scoped memory for tpu_custom_call.1']
    %14 = vsyncpa [#allocation3], 0
    %s15 = scalar_lea.sflag [#allocation3], 1
    %16 = vsyncpa %s15, 0
    loop: start=0, step=1, limit=4
    $region2: #{tpu_custom_call.1} parent=1 // loop_pre_header
      _
    $region3: #{tpu_custom_call.1} parent=1 // loop_header
      %s18 = sphi 0, %s22
      %p19 = scmp.ge.s32.totalorder %s18, 4
      %s25 = sphi 0, %s37
      %s26 = sphi 0, %s33
      %s27 = sphi 0, %s25
      %s28 = sphi 0, %s26
      %s29 = sphi 0, %s27
      %s30 = sphi 0, %s28
      %s42 = sphi 0, %s44
      %s45 = sphi 0, %s42
      %s46 = sphi 0, %s45
      %s62 = sphi 0, %s46
      %s70 = sphi 0, %s72
      %s73 = sphi 0, %s70
      %s74 = sphi 0, %s73
      %s90 = sphi 0, %s74
      %s94 = sphi 0, %s94
      %s96 = sphi 0, %s94
      %s97 = sphi 0, %s96
      %s111 = sphi 0, %s97
      %s115 = sphi 0, %s115
      %s117 = sphi 0, %s115
      %s118 = sphi 0, %s117
      %s132 = sphi 0, %s118
      %s136 = sphi 0, %s136
      %s138 = sphi 0, %s136
      %s139 = sphi 0, %s138
      %s153 = sphi 0, %s139
      %s157 = sphi 0, %s157
      %s159 = sphi 0, %s157
      %s160 = sphi 0, %s159
      %s174 = sphi 0, %s160
      %s178 = sphi 0, %s178
      %s180 = sphi 0, %s178
      %s181 = sphi 0, %s180
      %s195 = sphi 0, %s181
      %s203 = sphi 0, %s205
      %s206 = sphi 0, %s203
      %s207 = sphi 0, %s206
      %s223 = sphi 0, %s207
      %s231 = sphi 0, %s233
      %s234 = sphi 0, %s231
      %s235 = sphi 0, %s234
      %s251 = sphi 0, %s235
    $region4: #{tpu_custom_call.1} parent=1 // loop_header_branch
      %21 = sbr.rel (%p19) target = $region8
    $region5: #{tpu_custom_call.1} parent=1 // loop_body
      %s23 = ssub.s32 %s18, 1
      %s24 = ssub.s32 %s18, 2
      %s31 = sadd.s32 1, %s26
      %p32 = scmp.ge.s32.totalorder %s31, 1
      %s33 = scalar_select %p32, 0, %s31
      %s34 = sadd.s32 1, %s25
      %s35 = scalar_select %p32, %s34, %s25
      %p36 = scmp.ge.s32.totalorder %s35, 2
      %s37 = scalar_select %p36, 0, %s35
      %s38 = ssub.s32 %s25, %s37
      %s39 = ssub.s32 %s26, %s33
      %s40 = sor.u32 %s38, %s39
      %p41 = scmp.eq.s32.totalorder %s40, 0
      %s43 = sadd.s32 %s42, 1
      %s44 = scalar_select %p41, %s42, %s43
      %p47 = pneg %p41
      %p48 = scmp.eq.s32.totalorder %s18, 1
      %p49 = por %p47, %p48
      %p50 = scmp.ne.s32.totalorder %s42, %s45
      %p51 = scmp.eq.s32.totalorder %s18, 0
      %p52 = por %p50, %p51
      %p53 = scmp.ne.s32.totalorder %s42, %s45
      %p54 = scmp.eq.s32.totalorder %s23, 1
      %p55 = por %p53, %p54
      %p56 = scmp.ne.s32.totalorder %s45, %s46
      %p57 = scmp.eq.s32.totalorder %s23, 0
      %p58 = por %p56, %p57
      %p59 = scmp.ne.s32.totalorder %s45, %s46
      %p60 = scmp.eq.s32.totalorder %s24, 1
      %p61 = por %p59, %p60
      %p63 = scmp.ne.s32.totalorder %s46, %s62
      %p64 = scmp.eq.s32.totalorder %s24, 0
      %p65 = por %p63, %p64
      %s66 = ssub.s32 %s25, %s37
      %s67 = ssub.s32 %s26, %s33
      %s68 = sor.u32 %s66, %s67
      %p69 = scmp.eq.s32.totalorder %s68, 0
      %s71 = sadd.s32 %s70, 1
      %s72 = scalar_select %p69, %s70, %s71
      %p75 = pneg %p69
      %p76 = scmp.eq.s32.totalorder %s18, 1
      %p77 = por %p75, %p76
      %p78 = scmp.ne.s32.totalorder %s70, %s73
      %p79 = scmp.eq.s32.totalorder %s18, 0
      %p80 = por %p78, %p79
      %p81 = scmp.ne.s32.totalorder %s70, %s73
      %p82 = scmp.eq.s32.totalorder %s23, 1
      %p83 = por %p81, %p82
      %p84 = scmp.ne.s32.totalorder %s73, %s74
      %p85 = scmp.eq.s32.totalorder %s23, 0
      %p86 = por %p84, %p85
      %p87 = scmp.ne.s32.totalorder %s73, %s74
      %p88 = scmp.eq.s32.totalorder %s24, 1
      %p89 = por %p87, %p88
      %p91 = scmp.ne.s32.totalorder %s74, %s90
      %p92 = scmp.eq.s32.totalorder %s24, 0
      %p93 = por %p91, %p92
      %s95 = sadd.s32 %s94, 1
      %p98 = scmp.eq.s32.totalorder %s18, 1
      %p99 = scmp.ne.s32.totalorder %s94, %s96
      %p100 = scmp.eq.s32.totalorder %s18, 0
      %p101 = por %p99, %p100
      %p102 = scmp.ne.s32.totalorder %s94, %s96
      %p103 = scmp.eq.s32.totalorder %s23, 1
      %p104 = por %p102, %p103
      %p105 = scmp.ne.s32.totalorder %s96, %s97
      %p106 = scmp.eq.s32.totalorder %s23, 0
      %p107 = por %p105, %p106
      %p108 = scmp.ne.s32.totalorder %s96, %s97
      %p109 = scmp.eq.s32.totalorder %s24, 1
      %p110 = por %p108, %p109
      %p112 = scmp.ne.s32.totalorder %s97, %s111
      %p113 = scmp.eq.s32.totalorder %s24, 0
      %p114 = por %p112, %p113
      %s116 = sadd.s32 %s115, 1
      %p119 = scmp.eq.s32.totalorder %s18, 1
      %p120 = scmp.ne.s32.totalorder %s115, %s117
      %p121 = scmp.eq.s32.totalorder %s18, 0
      %p122 = por %p120, %p121
      %p123 = scmp.ne.s32.totalorder %s115, %s117
      %p124 = scmp.eq.s32.totalorder %s23, 1
      %p125 = por %p123, %p124
      %p126 = scmp.ne.s32.totalorder %s117, %s118
      %p127 = scmp.eq.s32.totalorder %s23, 0
      %p128 = por %p126, %p127
      %p129 = scmp.ne.s32.totalorder %s117, %s118
      %p130 = scmp.eq.s32.totalorder %s24, 1
      %p131 = por %p129, %p130
      %p133 = scmp.ne.s32.totalorder %s118, %s132
      %p134 = scmp.eq.s32.totalorder %s24, 0
      %p135 = por %p133, %p134
      %s137 = sadd.s32 %s136, 1
      %p140 = scmp.eq.s32.totalorder %s18, 1
      %p141 = scmp.ne.s32.totalorder %s136, %s138
      %p142 = scmp.eq.s32.totalorder %s18, 0
      %p143 = por %p141, %p142
      %p144 = scmp.ne.s32.totalorder %s136, %s138
      %p145 = scmp.eq.s32.totalorder %s23, 1
      %p146 = por %p144, %p145
      %p147 = scmp.ne.s32.totalorder %s138, %s139
      %p148 = scmp.eq.s32.totalorder %s23, 0
      %p149 = por %p147, %p148
      %p150 = scmp.ne.s32.totalorder %s138, %s139
      %p151 = scmp.eq.s32.totalorder %s24, 1
      %p152 = por %p150, %p151
      %p154 = scmp.ne.s32.totalorder %s139, %s153
      %p155 = scmp.eq.s32.totalorder %s24, 0
      %p156 = por %p154, %p155
      %s158 = sadd.s32 %s157, 1
      %p161 = scmp.eq.s32.totalorder %s18, 1
      %p162 = scmp.ne.s32.totalorder %s157, %s159
      %p163 = scmp.eq.s32.totalorder %s18, 0
      %p164 = por %p162, %p163
      %p165 = scmp.ne.s32.totalorder %s157, %s159
      %p166 = scmp.eq.s32.totalorder %s23, 1
      %p167 = por %p165, %p166
      %p168 = scmp.ne.s32.totalorder %s159, %s160
      %p169 = scmp.eq.s32.totalorder %s23, 0
      %p170 = por %p168, %p169
      %p171 = scmp.ne.s32.totalorder %s159, %s160
      %p172 = scmp.eq.s32.totalorder %s24, 1
      %p173 = por %p171, %p172
      %p175 = scmp.ne.s32.totalorder %s160, %s174
      %p176 = scmp.eq.s32.totalorder %s24, 0
      %p177 = por %p175, %p176
      %s179 = sadd.s32 %s178, 1
      %p182 = scmp.eq.s32.totalorder %s18, 1
      %p183 = scmp.ne.s32.totalorder %s178, %s180
      %p184 = scmp.eq.s32.totalorder %s18, 0
      %p185 = por %p183, %p184
      %p186 = scmp.ne.s32.totalorder %s178, %s180
      %p187 = scmp.eq.s32.totalorder %s23, 1
      %p188 = por %p186, %p187
      %p189 = scmp.ne.s32.totalorder %s180, %s181
      %p190 = scmp.eq.s32.totalorder %s23, 0
      %p191 = por %p189, %p190
      %p192 = scmp.ne.s32.totalorder %s180, %s181
      %p193 = scmp.eq.s32.totalorder %s24, 1
      %p194 = por %p192, %p193
      %p196 = scmp.ne.s32.totalorder %s181, %s195
      %p197 = scmp.eq.s32.totalorder %s24, 0
      %p198 = por %p196, %p197
      %s199 = ssub.s32 %s25, %s37
      %s200 = ssub.s32 %s26, %s33
      %s201 = sor.u32 %s199, %s200
      %p202 = scmp.eq.s32.totalorder %s201, 0
      %s204 = sadd.s32 %s203, 1
      %s205 = scalar_select %p202, %s203, %s204
      %p208 = pneg %p202
      %p209 = scmp.eq.s32.totalorder %s18, 1
      %p210 = por %p208, %p209
      %p211 = scmp.ne.s32.totalorder %s203, %s206
      %p212 = scmp.eq.s32.totalorder %s18, 0
      %p213 = por %p211, %p212
      %p214 = scmp.ne.s32.totalorder %s203, %s206
      %p215 = scmp.eq.s32.totalorder %s23, 1
      %p216 = por %p214, %p215
      %p217 = scmp.ne.s32.totalorder %s206, %s207
      %p218 = scmp.eq.s32.totalorder %s23, 0
      %p219 = por %p217, %p218
      %p220 = scmp.ne.s32.totalorder %s206, %s207
      %p221 = scmp.eq.s32.totalorder %s24, 1
      %p222 = por %p220, %p221
      %p224 = scmp.ne.s32.totalorder %s207, %s223
      %p225 = scmp.eq.s32.totalorder %s24, 0
      %p226 = por %p224, %p225
      %s227 = ssub.s32 %s25, %s37
      %s228 = ssub.s32 %s26, %s33
      %s229 = sor.u32 %s227, %s228
      %p230 = scmp.eq.s32.totalorder %s229, 0
      %s232 = sadd.s32 %s231, 1
      %s233 = scalar_select %p230, %s231, %s232
      %p236 = pneg %p230
      %p237 = scmp.eq.s32.totalorder %s18, 1
      %p238 = por %p236, %p237
      %p239 = scmp.ne.s32.totalorder %s231, %s234
      %p240 = scmp.eq.s32.totalorder %s18, 0
      %p241 = por %p239, %p240
      %p242 = scmp.ne.s32.totalorder %s231, %s234
      %p243 = scmp.eq.s32.totalorder %s23, 1
      %p244 = por %p242, %p243
      %p245 = scmp.ne.s32.totalorder %s234, %s235
      %p246 = scmp.eq.s32.totalorder %s23, 0
      %p247 = por %p245, %p246
      %p248 = scmp.ne.s32.totalorder %s234, %s235
      %p249 = scmp.eq.s32.totalorder %s24, 1
      %p250 = por %p248, %p249
      %p252 = scmp.ne.s32.totalorder %s235, %s251
      %p253 = scmp.eq.s32.totalorder %s24, 0
      %p254 = por %p252, %p253
      %p255 = scmp.le.s32.totalorder 1, %s18
      %p256 = scmp.lt.s32.totalorder %s18, 3
      %p257 = pnand %p255, %p256
      %p258 = pneg %p257
      // Predicated region
      $region9: #{tpu_custom_call.1} parent=5 // pred_check
        _
      $region10: #{tpu_custom_call.1} parent=5 // pred_check_branch
        %260 = sbr.rel (%p257) target = $region12
      $region11: #{tpu_custom_call.1} parent=5 // pred_region
        %s261 = ssub.s32 %s18, 1
        // Predicated region
        $region13: #{tpu_custom_call.1} parent=11 // pred_check
          %p262 = pneg %p107
        $region14: #{tpu_custom_call.1} parent=11 // pred_check_branch
          %264 = sbr.rel (%p262) target = $region16
        $region15: #{tpu_custom_call.1} parent=11 // pred_region
          _
        $region16: #{tpu_custom_call.1} parent=11 // pred_fallthru
          _
        // Predicated region
        $region17: #{tpu_custom_call.1} parent=11 // pred_check
          %p265 = pneg %p128
        $region18: #{tpu_custom_call.1} parent=11 // pred_check_branch
          %267 = sbr.rel (%p265) target = $region20
        $region19: #{tpu_custom_call.1} parent=11 // pred_region
          _
        $region20: #{tpu_custom_call.1} parent=11 // pred_fallthru
          _
        // Predicated region
        $region21: #{tpu_custom_call.1} parent=11 // pred_check
          %p268 = pneg %p149
        $region22: #{tpu_custom_call.1} parent=11 // pred_check_branch
          %270 = sbr.rel (%p268) target = $region24
        $region23: #{tpu_custom_call.1} parent=11 // pred_region
          _
        $region24: #{tpu_custom_call.1} parent=11 // pred_fallthru
          _
        // Predicated region
        $region25: #{tpu_custom_call.1} parent=11 // pred_check
          %p271 = pneg %p170
        $region26: #{tpu_custom_call.1} parent=11 // pred_check_branch
          %273 = sbr.rel (%p271) target = $region28
        $region27: #{tpu_custom_call.1} parent=11 // pred_region
          _
        $region28: #{tpu_custom_call.1} parent=11 // pred_fallthru
          _
        // Predicated region
        $region29: #{tpu_custom_call.1} parent=11 // pred_check
          %p274 = pneg %p191
        $region30: #{tpu_custom_call.1} parent=11 // pred_check_branch
          %276 = sbr.rel (%p274) target = $region32
        $region31: #{tpu_custom_call.1} parent=11 // pred_region
          _
        $region32: #{tpu_custom_call.1} parent=11 // pred_fallthru
          _
      $region12: #{tpu_custom_call.1} parent=5 // pred_fallthru
        _
      %p277 = scmp.lt.s32.totalorder %s18, 2
      // Predicated region
      $region33: #{tpu_custom_call.1} parent=5 // pred_check
        %p278 = pneg %p277
      $region34: #{tpu_custom_call.1} parent=5 // pred_check_branch
        %280 = sbr.rel (%p278) target = $region36
      $region35: #{tpu_custom_call.1} parent=5 // pred_region
        // Predicated region
        $region37: #{tpu_custom_call.1} parent=35 // pred_check
          %p281 = pneg %p52
        $region38: #{tpu_custom_call.1} parent=35 // pred_check_branch
          %283 = sbr.rel (%p281) target = $region40
        $region39: #{tpu_custom_call.1} parent=35 // pred_region
          %s284 = smul.u32 2, %s26
          %p285 = scmp.lt.s32.totalorder %s25, 1
          %s286 = scalar_select %p285, %s25, 1
          %p287 = scmp.lt.s32.totalorder %s284, 1
          %s288 = scalar_select %p287, %s284, 1
          %s289 = smul.addr %s286, 2
          %s290 = sadd.s32 %s288, %s289
          %s291 = smul.addr %s290, 2
          %s292 = scalar_lea.vmem %s0, %s291
          %s293 = smul.u32 2, %s26
        $region40: #{tpu_custom_call.1} parent=35 // pred_fallthru
          _
        // Predicated region
        $region41: #{tpu_custom_call.1} parent=35 // pred_check
          %p294 = pneg %p80
        $region42: #{tpu_custom_call.1} parent=35 // pred_check_branch
          %296 = sbr.rel (%p294) target = $region44
        $region43: #{tpu_custom_call.1} parent=35 // pred_region
          %s297 = smul.u32 2, %s26
          %p298 = scmp.lt.s32.totalorder %s25, 1
          %s299 = scalar_select %p298, %s25, 1
          %p300 = scmp.lt.s32.totalorder %s297, 1
          %s301 = scalar_select %p300, %s297, 1
          %s302 = smul.addr %s299, 2
          %s303 = sadd.s32 %s301, %s302
          %s304 = scalar_lea.vmem %s1, %s303
          %s305 = smul.u32 2, %s26
        $region44: #{tpu_custom_call.1} parent=35 // pred_fallthru
          _
      $region36: #{tpu_custom_call.1} parent=5 // pred_fallthru
        _
      %p306 = scmp.le.s32.totalorder 1, %s18
      %p307 = scmp.lt.s32.totalorder %s18, 3
      %p308 = pnand %p306, %p307
      %p309 = pneg %p308
      // Predicated region
      $region45: #{tpu_custom_call.1} parent=5 // pred_check
        _
      $region46: #{tpu_custom_call.1} parent=5 // pred_check_branch
        %311 = sbr.rel (%p308) target = $region48
      $region47: #{tpu_custom_call.1} parent=5 // pred_region
        %s312 = ssub.s32 %s18, 1
        %s313 = smul.u32 2, %s28
        %p314 = scmp.lt.s32.totalorder %s27, 1
        %s315 = scalar_select %p314, %s27, 1
        %p316 = scmp.lt.s32.totalorder %s313, 1
        %s317 = scalar_select %p316, %s313, 1
        %s318 = smul.addr %s315, 2
        %s319 = sadd.s32 %s317, %s318
        %s320 = smul.addr %s319, 2
        %s321 = scalar_lea.vmem %s0, %s320
        %p322 = pneg %p58
        %p323 = pneg %p55
        %s324 = smul.u32 2, %s28
        %p325 = scmp.lt.s32.totalorder %s27, 1
        %s326 = scalar_select %p325, %s27, 1
        %p327 = scmp.lt.s32.totalorder %s324, 1
        %s328 = scalar_select %p327, %s324, 1
        %s329 = smul.addr %s326, 2
        %s330 = sadd.s32 %s328, %s329
        %s331 = scalar_lea.vmem %s1, %s330
        %p332 = pneg %p86
        %p333 = pneg %p83
        %p334 = pneg %p107
        %p335 = pneg %p104
        %p336 = pneg %p128
        %p337 = pneg %p125
        %p338 = pneg %p149
        %p339 = pneg %p146
        %p340 = pneg %p170
        %p341 = pneg %p167
        %p342 = pneg %p191
        %p343 = pneg %p188
        %p344 = pneg %p219
        %p345 = pneg %p216
        %s346 = smul.u32 2, %s28
        %p347 = scmp.lt.s32.totalorder %s27, 1
        %s348 = scalar_select %p347, %s27, 1
        %p349 = scmp.lt.s32.totalorder %s346, 1
        %s350 = scalar_select %p349, %s346, 1
        %s351 = smul.addr %s348, 2
        %s352 = sadd.s32 %s350, %s351
        %s353 = smul.addr %s352, 4
        %s354 = scalar_lea.vmem %s7, %s353
        %p355 = pneg %p247
        %p356 = pneg %p244
        %s357 = sand.u32 %s234, 1
        %s358 = scalar_lea.sflag [#allocation3], %s357
        %s359 = sand.u32 %s234, 1
        %s360 = smul.addr %s359, 4
        %s361 = scalar_lea.vmem [#allocation2], %s360
        %s362 = smul.u32 2, %s28
        %p363 = scmp.lt.s32.totalorder %s27, 1
        %s364 = scalar_select %p363, %s27, 1
        %p365 = scmp.lt.s32.totalorder %s362, 1
        %s366 = scalar_select %p365, %s362, 1
        %s367 = smul.addr %s364, 2
        %s368 = sadd.s32 %s366, %s367
        %s369 = smul.addr %s368, 2
        %s370 = scalar_lea.vmem %s0, %s369
        %s371 = smul.u32 2, %s28
        %s372 = smul.u32 2, %s28
        %p373 = scmp.lt.s32.totalorder %s27, 1
        %s374 = scalar_select %p373, %s27, 1
        %p375 = scmp.lt.s32.totalorder %s372, 1
        %s376 = scalar_select %p375, %s372, 1
        %s377 = smul.addr %s374, 2
        %s378 = sadd.s32 %s376, %s377
        %s379 = scalar_lea.vmem %s1, %s378
        %s380 = smul.u32 2, %s28
        %s381 = smul.u32 2, %s28
        %p382 = scmp.lt.s32.totalorder %s27, 1
        %s383 = scalar_select %p382, %s27, 1
        %p384 = scmp.lt.s32.totalorder %s381, 1
        %s385 = scalar_select %p384, %s381, 1
        %s386 = smul.addr %s383, 2
        %s387 = sadd.s32 %s385, %s386
        %s388 = smul.addr %s387, 4
        %s389 = scalar_lea.vmem %s7, %s388
        %s390 = smul.u32 2, %s28
        %s391 = smul.u32 2, %s28
        %v392 = vld [vmem:[%s370] sm:$0xf]
        %v393 = vunpack.c.l.bf16 %v392
        %v394 = vld [vmem:[%s379] sm:$0x3]
        %v395 = vunpack.c.l.bf16 %v394
        %v396 = vld [vmem:[%s2] sm:$0xff]
        %v397 = vld [vmem:[%s2 + $0x8] sm:$0xff]
        %v398 = vld [vmem:[%s2 + $0x10] sm:$0xff]
        %v399 = vld [vmem:[%s2 + $0x18] sm:$0xff]
        %v400 = vld [vmem:[%s2 + $0x20] sm:$0xff]
        %v401 = vld [vmem:[%s2 + $0x28] sm:$0xff]
        %v402 = vld [vmem:[%s2 + $0x30] sm:$0xff]
        %v403 = vld [vmem:[%s2 + $0x38] sm:$0xff]
        %v404 = vld [vmem:[%s2 + $0x40] sm:$0xff]
        %v405 = vld [vmem:[%s2 + $0x48] sm:$0xff]
        %v406 = vld [vmem:[%s3] sm:$0xff]
        %v407 = vld [vmem:[%s3 + $0x8] sm:$0xff]
        %v408 = vld [vmem:[%s3 + $0x10] sm:$0xff]
        %v409 = vld [vmem:[%s3 + $0x18] sm:$0xff]
        %v410 = vld [vmem:[%s3 + $0x20] sm:$0xff]
        %v411 = vld [vmem:[%s3 + $0x28] sm:$0xff]
        %v412 = vld [vmem:[%s3 + $0x30] sm:$0xff]
        %v413 = vld [vmem:[%s3 + $0x38] sm:$0xff]
        %v414 = vld [vmem:[%s3 + $0x40] sm:$0xff]
        %v415 = vld [vmem:[%s3 + $0x48] sm:$0xff]
        %417 = vset.pattern.permute.xlu0 0
        %418 = vperm.xlu0 %417, %v406
        %v419 = vpop.permute.xlu0 %418
        %422 = vset.pattern.permute.xlu0 0
        %423 = vperm.xlu0 %422, %v407
        %v424 = vpop.permute.xlu0 %423
        %427 = vset.pattern.permute.xlu0 0
        %428 = vperm.xlu0 %427, %v408
        %v429 = vpop.permute.xlu0 %428
        %432 = vset.pattern.permute.xlu0 0
        %433 = vperm.xlu0 %432, %v409
        %v434 = vpop.permute.xlu0 %433
        %437 = vset.pattern.permute.xlu0 0
        %438 = vperm.xlu0 %437, %v410
        %v439 = vpop.permute.xlu0 %438
        %442 = vset.pattern.permute.xlu0 0
        %443 = vperm.xlu0 %442, %v411
        %v444 = vpop.permute.xlu0 %443
        %447 = vset.pattern.permute.xlu0 0
        %448 = vperm.xlu0 %447, %v412
        %v449 = vpop.permute.xlu0 %448
        %452 = vset.pattern.permute.xlu0 0
        %453 = vperm.xlu0 %452, %v413
        %v454 = vpop.permute.xlu0 %453
        %457 = vset.pattern.permute.xlu0 0
        %458 = vperm.xlu0 %457, %v414
        %v459 = vpop.permute.xlu0 %458
        %462 = vset.pattern.permute.xlu0 0
        %463 = vperm.xlu0 %462, %v415
        %v464 = vpop.permute.xlu0 %463
        %v467 = vcombine.high %v393, %v393
        %vm468 = vcmask 23552
        %v470 = vsel %vm468, %v396, 0
        %v473 = vsel %vm468, %v397, 0
        %v476 = vsel %vm468, %v398, 0
        %v479 = vsel %vm468, %v399, 0
        %v482 = vsel %vm468, %v400, 0
        %v485 = vsel %vm468, %v401, 0
        %v488 = vsel %vm468, %v402, 0
        %v491 = vsel %vm468, %v403, 0
        %v494 = vsel %vm468, %v404, 0
        %v497 = vsel %vm468, %v405, 0
        %vm499 = vcmask 1042432
        %v500 = vsel %vm499, %v393, 0
        %v502 = vsel %vm499, %v467, 0
        %504 = vmatprep.subr.mxu0 0.0
        %505 = vmatpush1.msra.mxu0 0.0
        %506 = vmatprep.subr.mxu0 0.0
        %507 = vmatpush1.msra.mxu0 0.0
        %508 = vmatprep.subr.mxu0 0.0
        %509 = vmatpush1.msra.mxu0 0.0
        %510 = vmatprep.subr.mxu0 0.0
        %511 = vmatpush1.msra.mxu0 0.0
        %512 = vmatprep.subr.mxu0 0.0
        %513 = vmatpush1.msra.mxu0 0.0
        %514 = vmatprep.subr.mxu0 0.0
        %515 = vmatpush1.msra.mxu0 0.0
        %516 = vmatprep.subr.mxu0 0.0
        %517 = vmatpush1.msra.mxu0 0.0
        %518 = vmatprep.subr.mxu0 0.0
        %519 = vmatpush1.msra.mxu0 0.0
        %520 = vmatprep.subr.mxu0 0.0
        %521 = vmatpush1.msra.mxu0 0.0
        %522 = vmatprep.subr.mxu0 0.0
        %523 = vmatpush1.msra.mxu0 0.0
        %524 = vmatprep.subr.mxu0 0.0
        %525 = vmatpush1.msra.mxu0 0.0
        %526 = vmatprep.subr.mxu0 0.0
        %527 = vmatpush1.msra.mxu0 0.0
        %528 = vmatprep.subr.mxu0 0.0
        %529 = vmatpush1.msra.mxu0 0.0
        %530 = vmatprep.subr.mxu0 0.0
        %531 = vmatpush1.msra.mxu0 0.0
        %532 = vmatprep.subr.mxu0 0.0
        %533 = vmatpush1.msra.mxu0 0.0
        %534 = vmatprep.subr.mxu0 %v502
        %535 = vmatpush1.msra.mxu0 %v500
        %536 = vmatprep.subr.mxu0 0.0
        %537 = vmatpush2.msra.mxu0 0.0
        %538 = vmatprep.subr.mxu0 0.0
        %539 = vmatpush2.msra.mxu0 0.0
        %540 = vmatprep.subr.mxu0 0.0
        %541 = vmatpush2.msra.mxu0 0.0
        %542 = vmatprep.subr.mxu0 0.0
        %543 = vmatpush2.msra.mxu0 0.0
        %544 = vmatprep.subr.mxu0 0.0
        %545 = vmatpush2.msra.mxu0 0.0
        %546 = vmatprep.subr.mxu0 0.0
        %547 = vmatpush2.msra.mxu0 0.0
        %548 = vmatprep.subr.mxu0 0.0
        %549 = vmatpush2.msra.mxu0 0.0
        %550 = vmatprep.subr.mxu0 0.0
        %551 = vmatpush2.msra.mxu0 0.0
        %552 = vmatprep.subr.mxu0 0.0
        %553 = vmatpush2.msra.mxu0 0.0
        %554 = vmatprep.subr.mxu0 0.0
        %555 = vmatpush2.msra.mxu0 0.0
        %556 = vmatprep.subr.mxu0 0.0
        %557 = vmatpush2.msra.mxu0 0.0
        %558 = vmatprep.subr.mxu0 0.0
        %559 = vmatpush2.msra.mxu0 0.0
        %560 = vmatprep.subr.mxu0 0.0
        %561 = vmatpush2.msra.mxu0 0.0
        %562 = vmatprep.subr.mxu0 0.0
        %563 = vmatpush2.msra.mxu0 0.0
        %564 = vmatprep.subr.mxu0 0.0
        %565 = vmatpush2.msra.mxu0 0.0
        %566 = vmatprep.subr.mxu0 0.0
        %567 = vmatpush2.msra.mxu0 0.0
        %568 = vmatprep.mubr.f32.mxu0 0.0
        %569 = vmatmul.mubr.f32.gmra.mxu0 %v470
        %v570 = vpop.f32.mrf.mxu0
        %v571 = vadd.f32 %v419, %v570
        %v572 = vpop.f32.mrf.mxu0
        %v573 = vadd.f32 %v419, %v572
        %574 = vmatprep.mubr.f32.mxu0 0.0
        %575 = vmatmul.mubr.f32.gmra.mxu0 %v473
        %v576 = vpop.f32.mrf.mxu0
        %v577 = vadd.f32 %v424, %v576
        %v578 = vpop.f32.mrf.mxu0
        %v579 = vadd.f32 %v424, %v578
        %580 = vmatprep.mubr.f32.mxu0 0.0
        %581 = vmatmul.mubr.f32.gmra.mxu0 %v476
        %v582 = vpop.f32.mrf.mxu0
        %v583 = vadd.f32 %v429, %v582
        %v584 = vpop.f32.mrf.mxu0
        %v585 = vadd.f32 %v429, %v584
        %586 = vmatprep.mubr.f32.mxu0 0.0
        %587 = vmatmul.mubr.f32.gmra.mxu0 %v479
        %v588 = vpop.f32.mrf.mxu0
        %v589 = vadd.f32 %v434, %v588
        %v590 = vpop.f32.mrf.mxu0
        %v591 = vadd.f32 %v434, %v590
        %592 = vmatprep.mubr.f32.mxu0 0.0
        %593 = vmatmul.mubr.f32.gmra.mxu0 %v482
        %v594 = vpop.f32.mrf.mxu0
        %v595 = vadd.f32 %v439, %v594
        %v596 = vpop.f32.mrf.mxu0
        %v597 = vadd.f32 %v439, %v596
        %598 = vmatprep.mubr.f32.mxu0 0.0
        %599 = vmatmul.mubr.f32.gmra.mxu0 %v485
        %v600 = vpop.f32.mrf.mxu0
        %v601 = vadd.f32 %v444, %v600
        %v602 = vpop.f32.mrf.mxu0
        %v603 = vadd.f32 %v444, %v602
        %604 = vmatprep.mubr.f32.mxu0 0.0
        %605 = vmatmul.mubr.f32.gmra.mxu0 %v488
        %v606 = vpop.f32.mrf.mxu0
        %v607 = vadd.f32 %v449, %v606
        %v608 = vpop.f32.mrf.mxu0
        %v609 = vadd.f32 %v449, %v608
        %610 = vmatprep.mubr.f32.mxu0 0.0
        %611 = vmatmul.mubr.f32.gmra.mxu0 %v491
        %v612 = vpop.f32.mrf.mxu0
        %v613 = vadd.f32 %v454, %v612
        %v614 = vpop.f32.mrf.mxu0
        %v615 = vadd.f32 %v454, %v614
        %616 = vmatprep.mubr.f32.mxu0 0.0
        %617 = vmatmul.mubr.f32.gmra.mxu0 %v494
        %v618 = vpop.f32.mrf.mxu0
        %v619 = vadd.f32 %v459, %v618
        %v620 = vpop.f32.mrf.mxu0
        %v621 = vadd.f32 %v459, %v620
        %622 = vmatprep.mubr.f32.mxu0 0.0
        %623 = vmatmul.mubr.f32.gmra.mxu0 %v497
        %v624 = vpop.f32.mrf.mxu0
        %v625 = vadd.f32 %v464, %v624
        %v626 = vpop.f32.mrf.mxu0
        %v627 = vadd.f32 %v464, %v626
        %628 = vdwg.mxu0
        %v629 = vmax.f32 %v571, 0.0
        %v630 = vmax.f32 %v573, 0.0
        %vm631 = vcmp.ne.f32.partialorder %v571, %v571
        %vm632 = vcmp.ne.f32.partialorder %v573, %v573
        %v633 = vadd.f32 %v571, 0.0
        %v634 = vadd.f32 %v573, 0.0
        %v635 = vand.u32 2147483647, %v571
        %v636 = vand.u32 2147483647, %v573
        %v637 = vsub.f32 0.0, %v635
        %v638 = vsub.f32 0.0, %v636
        %v639 = vmul.f32 %v637, 1.442695
        %v640 = vpow.pop %v639
        %v641 = vmul.f32 %v638, 1.442695
        %v642 = vpow.pop %v641
        %v643 = vadd.f32 %v640, 1.0
        %v644 = vlog2.pop %v643
        %v645 = vmul.f32 %v644, 0.6931472
        %v646 = vmul.f32 -0.5, %v640
        %v647 = vadd.f32 %v646, 1.0
        %v648 = vmul.f32 %v647, %v640
        %v649 = vand.u32 2147483647, %v640
        %vm650 = vcmp.lt.f32.partialorder %v649, 0.0004427343
        %v651 = vsel %vm650, %v648, %v645
        %v652 = vadd.f32 %v642, 1.0
        %v653 = vlog2.pop %v652
        %v654 = vmul.f32 %v653, 0.6931472
        %v655 = vmul.f32 -0.5, %v642
        %v656 = vadd.f32 %v655, 1.0
        %v657 = vmul.f32 %v656, %v642
        %v658 = vand.u32 2147483647, %v642
        %vm659 = vcmp.lt.f32.partialorder %v658, 0.0004427343
        %v660 = vsel %vm659, %v657, %v654
        %v661 = vadd.f32 %v629, %v651
        %v662 = vadd.f32 %v630, %v660
        %v663 = vsel %vm631, %v633, %v661
        %v664 = vsel %vm632, %v634, %v662
        %vm665 = vcmp.gt.f32.partialorder %v577, 0.0
        %vm666 = vcmp.gt.f32.partialorder %v579, 0.0
        %vm667 = vcmp.gt.f32.partialorder %v583, 0.0
        %vm668 = vcmp.gt.f32.partialorder %v585, 0.0
        %vm669 = vcmp.gt.f32.partialorder %v589, 0.0
        %vm670 = vcmp.gt.f32.partialorder %v591, 0.0
        %vm671 = vcmp.gt.f32.partialorder %v595, 0.0
        %vm672 = vcmp.gt.f32.partialorder %v597, 0.0
        %vm673 = vcmp.gt.f32.partialorder %v601, 0.0
        %vm674 = vcmp.gt.f32.partialorder %v603, 0.0
        %vm675 = vcmp.gt.f32.partialorder %v607, 0.0
        %vm676 = vcmp.gt.f32.partialorder %v609, 0.0
        %v677 = vmul.f32 %v577, 0.02
        %v678 = vmul.f32 %v579, 0.02
        %v679 = vmul.f32 %v583, 0.02
        %v680 = vmul.f32 %v585, 0.02
        %v681 = vmul.f32 %v589, 0.02
        %v682 = vmul.f32 %v591, 0.02
        %v683 = vmul.f32 %v595, 0.02
        %v684 = vmul.f32 %v597, 0.02
        %v685 = vmul.f32 %v601, 0.02
        %v686 = vmul.f32 %v603, 0.02
        %v687 = vmul.f32 %v607, 0.02
        %v688 = vmul.f32 %v609, 0.02
        %v689 = vsel %vm665, %v577, %v677
        %v690 = vsel %vm666, %v579, %v678
        %v691 = vsel %vm667, %v583, %v679
        %v692 = vsel %vm668, %v585, %v680
        %v693 = vsel %vm669, %v589, %v681
        %v694 = vsel %vm670, %v591, %v682
        %v695 = vsel %vm671, %v595, %v683
        %v696 = vsel %vm672, %v597, %v684
        %v697 = vsel %vm673, %v601, %v685
        %v698 = vsel %vm674, %v603, %v686
        %v699 = vsel %vm675, %v607, %v687
        %v700 = vsel %vm676, %v609, %v688
        %vm701 = vcmp.gt.f32.partialorder %v613, 0.0
        %vm702 = vcmp.gt.f32.partialorder %v615, 0.0
        %vm703 = vcmp.gt.f32.partialorder %v619, 0.0
        %vm704 = vcmp.gt.f32.partialorder %v621, 0.0
        %v705 = vmul.f32 %v613, 0.02
        %v706 = vmul.f32 %v615, 0.02
        %v707 = vmul.f32 %v619, 0.02
        %v708 = vmul.f32 %v621, 0.02
        %v709 = vsel %vm701, %v613, %v705
        %v710 = vsel %vm702, %v615, %v706
        %v711 = vsel %vm703, %v619, %v707
        %v712 = vsel %vm704, %v621, %v708
        %v713 = vadd.f32 %v663, 1.0
        %v714 = vadd.f32 %v664, 1.0
        %v715 = vlaneseq
        %v716 = vshrl.u32 %v715, 7
        %v717 = vsub.s32 0, %v716
        %v718 = vrot.slane %v713, %v717
        %v719 = vlaneseq
        %v720 = vshrl.u32 %v719, 7
        %v721 = vsub.s32 0, %v720
        %v722 = vrot.slane %v714, %v721
        %v725 = vcombine.low %v718, %v722
        %v727 = vunpack.c.l.s4 1983009808
        %v728 = vunpack.c.0.s8 %v727
        %v729 = vlaneseq
        %v730 = vshrl.u32 %v729, 7
        %v731 = vsub.s32 %v728, %v730
        %v732 = vrot.slane %v725, %v731
        %v734 = vmul.f32 %v395, %v732
        %v735 = vld [vmem:[%s4] sm:$0xff]
        %v736 = vld [vmem:[%s4 + $0x8] sm:$0xff]
        %v737 = vld [vmem:[%s5] sm:$0xff]
        %v738 = vld [vmem:[%s5 + $0x8] sm:$0xff]
        %740 = vset.pattern.permute.xlu0 0
        %741 = vperm.xlu0 %740, %v737
        %v742 = vpop.permute.xlu0 %741
        %745 = vset.pattern.permute.xlu0 0
        %746 = vperm.xlu0 %745, %v738
        %v747 = vpop.permute.xlu0 %746
        %vm749 = vcmask 392192
        %v751 = vsel %vm749, %v735, 0
        %v754 = vsel %vm749, %v736, 0
        %756 = vmatprep.subr.mxu0 0.0
        %757 = vmatpush1.msra.mxu0 0.0
        %758 = vmatprep.subr.mxu0 0.0
        %759 = vmatpush1.msra.mxu0 0.0
        %760 = vmatprep.subr.mxu0 0.0
        %761 = vmatpush1.msra.mxu0 0.0
        %762 = vmatprep.subr.mxu0 0.0
        %763 = vmatpush1.msra.mxu0 0.0
        %764 = vmatprep.subr.mxu0 0.0
        %765 = vmatpush1.msra.mxu0 0.0
        %766 = vmatprep.subr.mxu0 0.0
        %767 = vmatpush1.msra.mxu0 0.0
        %768 = vmatprep.subr.mxu0 0.0
        %769 = vmatpush1.msra.mxu0 0.0
        %770 = vmatprep.subr.mxu0 0.0
        %771 = vmatpush1.msra.mxu0 0.0
        %772 = vmatprep.subr.mxu0 0.0
        %773 = vmatpush1.msra.mxu0 0.0
        %774 = vmatprep.subr.mxu0 0.0
        %775 = vmatpush1.msra.mxu0 0.0
        %776 = vmatprep.subr.mxu0 %v700
        %777 = vmatpush1.msra.mxu0 %v699
        %778 = vmatprep.subr.mxu0 %v698
        %779 = vmatpush1.msra.mxu0 %v697
        %780 = vmatprep.subr.mxu0 %v696
        %781 = vmatpush1.msra.mxu0 %v695
        %782 = vmatprep.subr.mxu0 %v694
        %783 = vmatpush1.msra.mxu0 %v693
        %784 = vmatprep.subr.mxu0 %v692
        %785 = vmatpush1.msra.mxu0 %v691
        %786 = vmatprep.subr.mxu0 %v690
        %787 = vmatpush1.msra.mxu0 %v689
        %788 = vmatprep.subr.mxu0 0.0
        %789 = vmatpush2.msra.mxu0 0.0
        %790 = vmatprep.subr.mxu0 0.0
        %791 = vmatpush2.msra.mxu0 0.0
        %792 = vmatprep.subr.mxu0 0.0
        %793 = vmatpush2.msra.mxu0 0.0
        %794 = vmatprep.subr.mxu0 0.0
        %795 = vmatpush2.msra.mxu0 0.0
        %796 = vmatprep.subr.mxu0 0.0
        %797 = vmatpush2.msra.mxu0 0.0
        %798 = vmatprep.subr.mxu0 0.0
        %799 = vmatpush2.msra.mxu0 0.0
        %800 = vmatprep.subr.mxu0 0.0
        %801 = vmatpush2.msra.mxu0 0.0
        %802 = vmatprep.subr.mxu0 0.0
        %803 = vmatpush2.msra.mxu0 0.0
        %804 = vmatprep.subr.mxu0 0.0
        %805 = vmatpush2.msra.mxu0 0.0
        %806 = vmatprep.subr.mxu0 0.0
        %807 = vmatpush2.msra.mxu0 0.0
        %808 = vmatprep.subr.mxu0 0.0
        %809 = vmatpush2.msra.mxu0 0.0
        %810 = vmatprep.subr.mxu0 0.0
        %811 = vmatpush2.msra.mxu0 0.0
        %812 = vmatprep.subr.mxu0 0.0
        %813 = vmatpush2.msra.mxu0 0.0
        %814 = vmatprep.subr.mxu0 0.0
        %815 = vmatpush2.msra.mxu0 0.0
        %816 = vmatprep.subr.mxu0 0.0
        %817 = vmatpush2.msra.mxu0 0.0
        %818 = vmatprep.subr.mxu0 0.0
        %819 = vmatpush2.msra.mxu0 0.0
        %820 = vmatprep.mubr.f32.mxu0 0.0
        %821 = vmatmul.mubr.f32.gmra.mxu0 %v751
        %v822 = vpop.f32.mrf.mxu0
        %v823 = vadd.f32 %v742, %v822
        %v824 = vpop.f32.mrf.mxu0
        %v825 = vadd.f32 %v742, %v824
        %826 = vmatprep.mubr.f32.mxu0 0.0
        %827 = vmatmul.mubr.f32.gmra.mxu0 %v754
        %v828 = vpop.f32.mrf.mxu0
        %v829 = vadd.f32 %v747, %v828
        %v830 = vpop.f32.mrf.mxu0
        %v831 = vadd.f32 %v747, %v830
        %832 = vdwg.mxu0
        %v833 = vld [vmem:[%s6] sm:$0xff]
        %835 = vset.pattern.permute.xlu0 2
        %836 = vperm.xlu0 %835, %v833
        %v837 = vpop.permute.xlu0 %836
        %v839 = vlaneseq
        %v840 = vshrl.u32 %v839, 7
        %v841 = vsub.s32 0, %v840
        %v842 = vrot.slane %v663, %v841
        %v843 = vlaneseq
        %v844 = vshrl.u32 %v843, 7
        %v845 = vsub.s32 0, %v844
        %v846 = vrot.slane %v664, %v845
        %v847 = vmul.f32 %v837, %v842
        %v848 = vmul.f32 %v837, %v846
        %v849 = vadd.f32 %v823, %v847
        %v850 = vadd.f32 %v825, %v848
        %851 = vset.pattern.permute.xlu0 0
        %852 = vperm.xlu0 %851, %v833
        %v853 = vpop.permute.xlu0 %852
        %v856 = vlaneseq
        %v857 = vshrl.u32 %v856, 7
        %v858 = vsub.s32 0, %v857
        %v859 = vrot.slane %v734, %v858
        %v860 = vlaneseq
        %v861 = vshrl.u32 %v860, 7
        %v862 = vsub.s32 2, %v861
        %v863 = vrot.slane %v734, %v862
        %v866 = vlaneseq
        %v867 = vshrl.u32 %v866, 7
        %v868 = vsub.s32 0, %v867
        %v869 = vrot.slane %v859, %v868
        %v870 = vlaneseq
        %v871 = vshrl.u32 %v870, 7
        %v872 = vsub.s32 0, %v871
        %v873 = vrot.slane %v863, %v872
        %v874 = vmul.f32 %v853, %v869
        %v875 = vmul.f32 %v853, %v873
        %v876 = vadd.f32 %v849, %v874
        %v877 = vadd.f32 %v850, %v875
        %878 = vset.pattern.permute.xlu0 1
        %879 = vperm.xlu0 %878, %v833
        %v880 = vpop.permute.xlu0 %879
        %v882 = vlaneseq
        %v883 = vshrl.u32 %v882, 7
        %v884 = vsub.s32 1, %v883
        %v885 = vrot.slane %v734, %v884
        %v886 = vlaneseq
        %v887 = vshrl.u32 %v886, 7
        %v888 = vsub.s32 3, %v887
        %v889 = vrot.slane %v734, %v888
        %v892 = vlaneseq
        %v893 = vshrl.u32 %v892, 7
        %v894 = vsub.s32 1, %v893
        %v895 = vrot.slane %v885, %v894
        %v896 = vlaneseq
        %v897 = vshrl.u32 %v896, 7
        %v898 = vsub.s32 1, %v897
        %v899 = vrot.slane %v889, %v898
        %v900 = vmul.f32 %v880, %v895
        %v901 = vmul.f32 %v880, %v899
        %v902 = vadd.f32 %v876, %v900
        %v903 = vadd.f32 %v877, %v901
        %v904 = vtanh.pop %v902
        %v905 = vtanh.pop %v903
        %v908 = vcombine.low %v904, %v905
        %v910 = vunpack.c.l.s4 1983009808
        %v911 = vunpack.c.0.s8 %v910
        %v912 = vlaneseq
        %v913 = vshrl.u32 %v912, 7
        %v914 = vsub.s32 %v911, %v913
        %v915 = vrot.slane %v908, %v914
        %v917 = vadd.f32 %v734, %v915
        %v919 = vlaneseq
        %v920 = vshrl.u32 %v919, 7
        %v921 = vsub.s32 0, %v920
        %v922 = vrot.slane %v917, %v921
        %v923 = vlaneseq
        %v924 = vshrl.u32 %v923, 7
        %v925 = vsub.s32 2, %v924
        %v926 = vrot.slane %v917, %v925
        %v929 = vlaneseq
        %v930 = vshrl.u32 %v929, 7
        %v931 = vsub.s32 0, %v930
        %v932 = vrot.slane %v922, %v931
        %v933 = vlaneseq
        %v934 = vshrl.u32 %v933, 7
        %v935 = vsub.s32 0, %v934
        %v936 = vrot.slane %v926, %v935
        %v937 = vmul.f32 %v853, %v932
        %v938 = vmul.f32 %v853, %v936
        %v939 = vadd.f32 %v849, %v937
        %v940 = vadd.f32 %v850, %v938
        %v941 = vlaneseq
        %v942 = vshrl.u32 %v941, 7
        %v943 = vsub.s32 1, %v942
        %v944 = vrot.slane %v917, %v943
        %v945 = vlaneseq
        %v946 = vshrl.u32 %v945, 7
        %v947 = vsub.s32 3, %v946
        %v948 = vrot.slane %v917, %v947
        %v951 = vlaneseq
        %v952 = vshrl.u32 %v951, 7
        %v953 = vsub.s32 1, %v952
        %v954 = vrot.slane %v944, %v953
        %v955 = vlaneseq
        %v956 = vshrl.u32 %v955, 7
        %v957 = vsub.s32 1, %v956
        %v958 = vrot.slane %v948, %v957
        %v959 = vmul.f32 %v880, %v954
        %v960 = vmul.f32 %v880, %v958
        %v961 = vadd.f32 %v939, %v959
        %v962 = vadd.f32 %v940, %v960
        %v963 = vtanh.pop %v961
        %v964 = vtanh.pop %v962
        %v967 = vcombine.low %v963, %v964
        %v969 = vunpack.c.l.s4 1983009808
        %v970 = vunpack.c.0.s8 %v969
        %v971 = vlaneseq
        %v972 = vshrl.u32 %v971, 7
        %v973 = vsub.s32 %v970, %v972
        %v974 = vrot.slane %v967, %v973
        %v976 = vadd.f32 %v917, %v974
        %v978 = vlaneseq
        %v979 = vshrl.u32 %v978, 7
        %v980 = vsub.s32 0, %v979
        %v981 = vrot.slane %v976, %v980
        %v982 = vlaneseq
        %v983 = vshrl.u32 %v982, 7
        %v984 = vsub.s32 2, %v983
        %v985 = vrot.slane %v976, %v984
        %v988 = vlaneseq
        %v989 = vshrl.u32 %v988, 7
        %v990 = vsub.s32 0, %v989
        %v991 = vrot.slane %v981, %v990
        %v992 = vlaneseq
        %v993 = vshrl.u32 %v992, 7
        %v994 = vsub.s32 0, %v993
        %v995 = vrot.slane %v985, %v994
        %v996 = vmul.f32 %v853, %v991
        %v997 = vmul.f32 %v853, %v995
        %v998 = vadd.f32 %v849, %v996
        %v999 = vadd.f32 %v850, %v997
        %v1000 = vlaneseq
        %v1001 = vshrl.u32 %v1000, 7
        %v1002 = vsub.s32 1, %v1001
        %v1003 = vrot.slane %v976, %v1002
        %v1004 = vlaneseq
        %v1005 = vshrl.u32 %v1004, 7
        %v1006 = vsub.s32 3, %v1005
        %v1007 = vrot.slane %v976, %v1006
        %v1010 = vlaneseq
        %v1011 = vshrl.u32 %v1010, 7
        %v1012 = vsub.s32 1, %v1011
        %v1013 = vrot.slane %v1003, %v1012
        %v1014 = vlaneseq
        %v1015 = vshrl.u32 %v1014, 7
        %v1016 = vsub.s32 1, %v1015
        %v1017 = vrot.slane %v1007, %v1016
        %v1018 = vmul.f32 %v880, %v1013
        %v1019 = vmul.f32 %v880, %v1017
        %v1020 = vadd.f32 %v998, %v1018
        %v1021 = vadd.f32 %v999, %v1019
        %v1022 = vtanh.pop %v1020
        %v1023 = vtanh.pop %v1021
        %v1026 = vcombine.low %v1022, %v1023
        %v1028 = vunpack.c.l.s4 1983009808
        %v1029 = vunpack.c.0.s8 %v1028
        %v1030 = vlaneseq
        %v1031 = vshrl.u32 %v1030, 7
        %v1032 = vsub.s32 %v1029, %v1031
        %v1033 = vrot.slane %v1026, %v1032
        %v1035 = vadd.f32 %v976, %v1033
        %v1036 = vadd.f32 %v709, %v711
        %v1037 = vrot.slane %v1036, 4
        %v1038 = vadd.f32 %v1036, %v1037
        %v1039 = vrot.slane %v1038, 2
        %v1040 = vadd.f32 %v1038, %v1039
        %v1041 = vrot.slane %v1040, 1
        %v1042 = vadd.f32 %v1040, %v1041
        %v1043 = vadd.f32 %v710, %v712
        %v1044 = vrot.slane %v1043, 4
        %v1045 = vadd.f32 %v1043, %v1044
        %v1046 = vrot.slane %v1045, 2
        %v1047 = vadd.f32 %v1045, %v1046
        %v1048 = vrot.slane %v1047, 1
        %v1049 = vadd.f32 %v1047, %v1048
        %v1050 = vrcp.pop 16.0
        %v1051 = vmul.f32 %v1042, %v1050
        %v1052 = vmul.f32 %v1049, %v1050
        %v1053 = vxor.u32 %v1051, 2147483648
        %v1054 = vxor.u32 %v1052, 2147483648
        %v1055 = vmul.f32 %v1053, 1.442695
        %v1056 = vpow.pop %v1055
        %v1057 = vmul.f32 %v1054, 1.442695
        %v1058 = vpow.pop %v1057
        %v1059 = vadd.f32 %v1056, 1.0
        %v1060 = vadd.f32 %v1058, 1.0
        %v1061 = vrcp.pop %v1059
        %v1062 = vmul.f32 1.0, %v1061
        %v1063 = vrcp.pop %v1060
        %v1064 = vmul.f32 1.0, %v1063
        %1065 = vset.pattern.permute.xlu0 3
        %1066 = vperm.xlu0 %1065, %v833
        %v1067 = vpop.permute.xlu0 %1066
        %v1069 = vmul.f32 %v1067, %v842
        %v1070 = vmul.f32 %v1067, %v846
        %v1071 = vadd.f32 %v625, %v1069
        %v1072 = vadd.f32 %v627, %v1070
        %v1073 = vadd.f32 %v1071, %v829
        %v1074 = vadd.f32 %v1072, %v831
        %v1075 = vmul.f32 %v1062, %v1073
        %v1076 = vmul.f32 %v1064, %v1074
        %1077 = vset.pattern.permute.xlu0 4
        %1078 = vperm.xlu0 %1077, %v833
        %v1079 = vpop.permute.xlu0 %1078
        %v1081 = vadd.f32 %v1075, %v1079
        %v1082 = vadd.f32 %v1076, %v1079
        %v1085 = vcombine.low %v1081, %v1082
        %1087 = vst [vmem:[%s389] sm:$0x77] %v1085
        %1088 = vst [vmem:[%s361] sm:$0xf] %v1035
        %s1089 = smul.u32 2, %s28
        %p1090 = scmp.lt.s32.totalorder %s27, 1
        %s1091 = scalar_select %p1090, %s27, 1
        %p1092 = scmp.lt.s32.totalorder %s1089, 1
        %s1093 = scalar_select %p1092, %s1089, 1
        %s1094 = smul.addr %s1091, 2
        %s1095 = sadd.s32 %s1093, %s1094
        %s1096 = smul.addr %s1095, 4
        %s1097 = scalar_lea.vmem %s7, %s1096
        %s1098 = sand.u32 %s234, 1
        %s1099 = scalar_lea.sflag [#allocation3], %s1098
        %s1100 = sand.u32 %s234, 1
        %s1101 = smul.addr %s1100, 4
        %s1102 = scalar_lea.vmem [#allocation2], %s1101
        // Predicated region
        $region49: #{tpu_custom_call.1} parent=47 // pred_check
          %p1103 = pneg %p216
        $region50: #{tpu_custom_call.1} parent=47 // pred_check_branch
          %1105 = sbr.rel (%p1103) target = $region52
        $region51: #{tpu_custom_call.1} parent=47 // pred_region
          %s1106 = smul.u32 2, %s28
        $region52: #{tpu_custom_call.1} parent=47 // pred_fallthru
          _
        // Predicated region
        $region53: #{tpu_custom_call.1} parent=47 // pred_check
          %p1107 = pneg %p244
        $region54: #{tpu_custom_call.1} parent=47 // pred_check_branch
          %1109 = sbr.rel (%p1107) target = $region56
        $region55: #{tpu_custom_call.1} parent=47 // pred_region
          %s1110 = smul.u32 2, %s28
          %s1112 = ssub.s32 64, 64
          %1113 = vsyncadd %s1099, %s1112
          %s1114 = smul.addr %s27, 2
          %s1115 = sadd.s32 %s1110, %s1114
          %s1116 = smul.addr %s1115, 32
          %s1117 = scalar_lea.hbm %s8, %s1116
          %s1119 = sshll.u32 %s1102, 4
          %s1120 = int_to_ptr.vmem [resolvable:$true] %s1119
          %1122 = dma.vmem_to_hbm [thread:$0]  %s1120, 64, %s1117, %s1099
        $region56: #{tpu_custom_call.1} parent=47 // pred_fallthru
          _
      $region48: #{tpu_custom_call.1} parent=5 // pred_fallthru
        _
      %p1123 = scmp.le.s32.totalorder 2, %s18
      // Predicated region
      $region57: #{tpu_custom_call.1} parent=5 // pred_check
        %p1124 = pneg %p1123
      $region58: #{tpu_custom_call.1} parent=5 // pred_check_branch
        %1126 = sbr.rel (%p1124) target = $region60
      $region59: #{tpu_custom_call.1} parent=5 // pred_region
        %s1127 = ssub.s32 %s18, 2
        // Predicated region
        $region61: #{tpu_custom_call.1} parent=59 // pred_check
          %p1128 = pneg %p222
        $region62: #{tpu_custom_call.1} parent=59 // pred_check_branch
          %1130 = sbr.rel (%p1128) target = $region64
        $region63: #{tpu_custom_call.1} parent=59 // pred_region
          %s1131 = smul.u32 2, %s30
          %p1132 = scmp.lt.s32.totalorder %s29, 1
          %s1133 = scalar_select %p1132, %s29, 1
          %p1134 = scmp.lt.s32.totalorder %s1131, 1
          %s1135 = scalar_select %p1134, %s1131, 1
          %s1136 = smul.addr %s1133, 2
          %s1137 = sadd.s32 %s1135, %s1136
          %s1138 = smul.addr %s1137, 4
          %s1139 = scalar_lea.vmem %s7, %s1138
        $region64: #{tpu_custom_call.1} parent=59 // pred_fallthru
          _
        // Predicated region
        $region65: #{tpu_custom_call.1} parent=59 // pred_check
          %p1140 = pneg %p250
        $region66: #{tpu_custom_call.1} parent=59 // pred_check_branch
          %1142 = sbr.rel (%p1140) target = $region68
        $region67: #{tpu_custom_call.1} parent=59 // pred_region
          %s1143 = sand.u32 %s235, 1
          %s1144 = scalar_lea.sflag [#allocation3], %s1143
          %s1145 = sand.u32 %s235, 1
          %s1146 = smul.addr %s1145, 4
          %s1147 = scalar_lea.vmem [#allocation2], %s1146
          %1148 = dma.done %s1144, 64
        $region68: #{tpu_custom_call.1} parent=59 // pred_fallthru
          _
      $region60: #{tpu_custom_call.1} parent=5 // pred_fallthru
        _
    $region6: #{tpu_custom_call.1} parent=1 // loop_footer
      %s22 = sadd.s32 1, %s18
    $region7: #{tpu_custom_call.1} parent=1 // loop_footer_branch
      %17 = sbr.rel target = $region3
    $region8: #{tpu_custom_call.1} parent=1 // loop_exit
      _
    %1149 = vsyncpa [#allocation3], 1
    %s1150 = scalar_lea.sflag [#allocation3], 1
    %1151 = vsyncpa %s1150, 1

</llo_original>
